<compile_context>
chip_gen: v7x
topology: tpu7x:2x2x1
jax: 0.10.0
libtpu: 0.0.40
codegen_flags: <defaults>
</compile_context>

<pallas_src>
import functools

import jax
import jax.numpy as jnp
from jax.experimental import pallas as pl
from jax.experimental.pallas import tpu as pltpu


def _cls_head_kernel(x_ref, wd_ref, bd_ref, wo_ref, bo_ref, o_ref):
    # x tile: (BM, H). Weights are already bf16 and VMEM-resident.
    x = x_ref[...].astype(jnp.bfloat16)

    # dense: x @ W_d  (bf16 x bf16 inputs, f32 accumulation on the MXU)
    h = jnp.dot(x, wd_ref[...], preferred_element_type=jnp.float32)
    h = h + bd_ref[...]          # f32 bias add on the accumulator (VPU)
    h = jnp.tanh(h)              # EUP

    # out_proj: h @ W_o + b_o  (columns lane-padded to Lp)
    y = jnp.dot(h.astype(jnp.bfloat16), wo_ref[...],
                preferred_element_type=jnp.float32)
    y = y + bo_ref[...]

    o_ref[...] = y.astype(o_ref.dtype)


def _round_up(x, m):
    return ((x + m - 1) // m) * m


@functools.partial(jax.jit, static_argnames=("block_batch",))
def classification_head(x, w_dense, b_dense, w_out, b_out, *, block_batch=512):
    """x: [B, H], w_dense: [H, H], b_dense: [H], w_out: [H, L], b_out: [L]
    -> logits: [B, L]."""
    B, H = x.shape
    L = w_out.shape[-1]

    # Lane-pad the label dim so the output store is a full-width (128-lane) vst.
    Lp = _round_up(L, 128)

    # Batch tile: at most `block_batch` rows, at least one 8-row sublane tile.
    BM = min(block_batch, _round_up(B, 8))
    B_pad = _round_up(B, BM)
    grid = (B_pad // BM,)

    # Prepare operands: bf16 MXU inputs, f32 row-vector biases, zero padding.
    x_p = x if B_pad == B else jnp.pad(x, ((0, B_pad - B), (0, 0)))
    wd = w_dense.astype(jnp.bfloat16)
    wo = jnp.pad(w_out, ((0, 0), (0, Lp - L))).astype(jnp.bfloat16)
    bd = b_dense.reshape(1, H).astype(jnp.float32)
    bo = jnp.pad(b_out.reshape(1, L), ((0, 0), (0, Lp - L))).astype(jnp.float32)

    # VMEM budget: resident weights/biases + double-buffered x and out tiles.
    x_bytes = BM * H * x_p.dtype.itemsize
    out_bytes = BM * Lp * x.dtype.itemsize
    w_bytes = wd.size * 2 + wo.size * 2 + bd.size * 4 + bo.size * 4
    needed = w_bytes + 2 * (x_bytes + out_bytes)
    vmem_limit = int(max(32 * 2**20, min(2 * needed, 120 * 2**20)))
    # TODO(synk): for H >= ~4096 on v7x (64 MiB VMEM) the resident w_dense no
    # longer fits; tile the hidden/contraction dim on an "arbitrary" grid axis
    # with an f32 accumulator scratch instead of keeping it whole.

    out_padded = pl.pallas_call(
        _cls_head_kernel,
        out_shape=jax.ShapeDtypeStruct((B_pad, Lp), x.dtype),
        grid_spec=pltpu.PrefetchScalarGridSpec(
            num_scalar_prefetch=0,
            grid=grid,
            in_specs=[
                pl.BlockSpec((BM, H), lambda i: (i, 0)),   # x: pipelined
                pl.BlockSpec((H, H), lambda i: (0, 0)),    # w_dense: resident
                pl.BlockSpec((1, H), lambda i: (0, 0)),    # b_dense: resident
                pl.BlockSpec((H, Lp), lambda i: (0, 0)),   # w_out (lane-padded)
                pl.BlockSpec((1, Lp), lambda i: (0, 0)),   # b_out (lane-padded)
            ],
            out_specs=pl.BlockSpec((BM, Lp), lambda i: (i, 0)),
        ),
        compiler_params=pltpu.CompilerParams(
            dimension_semantics=("parallel",),
            vmem_limit_bytes=vmem_limit,
        ),
    )(x_p, wd, bd, wo, bo)

    return out_padded[:B, :L]


def _reference(x, w_dense, b_dense, w_out, b_out):
    # Pure-JAX reference (dropout = identity in eval mode), f32 throughout.
    return jnp.tanh(x @ w_dense + b_dense) @ w_out + b_out


if __name__ == "__main__":
    # config.hidden_size = 32, num_labels = 4, batch = 8 (demo-sized).
    B, H, L = 8, 32, 4

    key = jax.random.PRNGKey(0)
    kx, kwd, kbd, kwo, kbo = jax.random.split(key, 5)

    x = jax.random.normal(kx, (B, H), dtype=jnp.float32)

    # Deterministic synthetic parameters (pre-transposed [in, out] layout).
    w_dense = jax.random.normal(kwd, (H, H), dtype=jnp.float32) * 0.05
    b_dense = jax.random.normal(kbd, (H,), dtype=jnp.float32) * 0.05
    w_out = jax.random.normal(kwo, (H, L), dtype=jnp.float32) * 0.05
    b_out = jax.random.normal(kbo, (L,), dtype=jnp.float32) * 0.05

    out = classification_head(x, w_dense, b_dense, w_out, b_out)
    jax.block_until_ready(out)

    ref = _reference(x, w_dense, b_dense, w_out, b_out)
    assert out.shape == (B, L)
    # bf16 MXU inputs (f32 accumulation) vs pure-f32 reference.
    assert jnp.allclose(out, ref, atol=1e-2, rtol=1e-2)

    # Second check: batch not a multiple of the tile -> exercises padding and a
    # multi-step batch grid (BM=128, grid=3).
    B2 = 300
    x2 = jax.random.normal(jax.random.PRNGKey(1), (B2, H), dtype=jnp.float32)
    out2 = classification_head(x2, w_dense, b_dense, w_out, b_out,
                               block_batch=128)
    jax.block_until_ready(out2)
    ref2 = _reference(x2, w_dense, b_dense, w_out, b_out)
    assert out2.shape == (B2, L)
    assert jnp.allclose(out2, ref2, atol=1e-2, rtol=1e-2)

    print("KERNEL_OK")
</pallas_src>

<mosaic_0001>
module attributes {stable_mosaic.version = 11 : i64} {
  func.func @_cls_head_kernel(%arg0: i32, %arg1: memref<8x32xf32, #tpu.memory_space<vmem>>, %arg2: memref<32x32xbf16, #tpu.memory_space<vmem>>, %arg3: memref<1x32xf32, #tpu.memory_space<vmem>>, %arg4: memref<32x128xbf16, #tpu.memory_space<vmem>>, %arg5: memref<1x128xf32, #tpu.memory_space<vmem>>, %arg6: memref<8x128xf32, #tpu.memory_space<vmem>>) attributes {dimension_semantics = [#tpu.dimension_semantics<parallel>], iteration_bounds = array<i64: 1>, scalar_prefetch = 0 : i64, scratch_operands = 0 : i64, tpu.core_type = #tpu.core_type<tc>, window_params = [{transform_indices = @transform_0, window_bounds = array<i64: 8, 32>}, {pipeline_mode = #tpu.pipeline_mode<synchronous>, transform_indices = @transform_1, window_bounds = array<i64: 32, 32>}, {pipeline_mode = #tpu.pipeline_mode<synchronous>, transform_indices = @transform_2, window_bounds = array<i64: 1, 32>}, {pipeline_mode = #tpu.pipeline_mode<synchronous>, transform_indices = @transform_3, window_bounds = array<i64: 32, 128>}, {pipeline_mode = #tpu.pipeline_mode<synchronous>, transform_indices = @transform_4, window_bounds = array<i64: 1, 128>}, {transform_indices = @transform_5, window_bounds = array<i64: 8, 128>}]} {
    %c0 = arith.constant 0 : index
    %c0_0 = arith.constant 0 : index
    %0 = vector.load %arg1[%c0, %c0_0] : memref<8x32xf32, #tpu.memory_space<vmem>>, vector<8x32xf32>
    %1 = arith.truncf %0 : vector<8x32xf32> to vector<8x32xbf16>
    %c0_1 = arith.constant 0 : index
    %c0_2 = arith.constant 0 : index
    %2 = vector.load %arg2[%c0_1, %c0_2] : memref<32x32xbf16, #tpu.memory_space<vmem>>, vector<32x32xbf16>
    %cst = arith.constant dense<0.000000e+00> : vector<8x32xf32>
    %3 = tpu.matmul %1, %2, %cst {dimension_numbers = #tpu.dot_dimension_numbers<[1], [0], [0], [1], [0, 0, 1, 1], [], []>} : vector<8x32xbf16>, vector<32x32xbf16>, vector<8x32xf32> -> vector<8x32xf32>
    %c0_3 = arith.constant 0 : index
    %c0_4 = arith.constant 0 : index
    %4 = vector.load %arg3[%c0_3, %c0_4] : memref<1x32xf32, #tpu.memory_space<vmem>>, vector<1x32xf32>
    %5 = vector.broadcast %4 : vector<1x32xf32> to vector<8x32xf32>
    %6 = arith.addf %3, %5 : vector<8x32xf32>
    %7 = math.tanh %6 : vector<8x32xf32>
    %8 = arith.truncf %7 : vector<8x32xf32> to vector<8x32xbf16>
    %c0_5 = arith.constant 0 : index
    %c0_6 = arith.constant 0 : index
    %9 = vector.load %arg4[%c0_5, %c0_6] : memref<32x128xbf16, #tpu.memory_space<vmem>>, vector<32x128xbf16>
    %cst_7 = arith.constant dense<0.000000e+00> : vector<8x128xf32>
    %10 = tpu.matmul %8, %9, %cst_7 {dimension_numbers = #tpu.dot_dimension_numbers<[1], [0], [0], [1], [0, 0, 1, 1], [], []>} : vector<8x32xbf16>, vector<32x128xbf16>, vector<8x128xf32> -> vector<8x128xf32>
    %c0_8 = arith.constant 0 : index
    %c0_9 = arith.constant 0 : index
    %11 = vector.load %arg5[%c0_8, %c0_9] : memref<1x128xf32, #tpu.memory_space<vmem>>, vector<1x128xf32>
    %12 = vector.broadcast %11 : vector<1x128xf32> to vector<8x128xf32>
    %13 = arith.addf %10, %12 : vector<8x128xf32>
    %c0_10 = arith.constant 0 : index
    %c0_11 = arith.constant 0 : index
    %14 = vector.load %arg6[%c0_10, %c0_11] : memref<8x128xf32, #tpu.memory_space<vmem>>, vector<8x128xf32>
    tpu.vector_store %arg6[%c0_10, %c0_11], %13 {strides = array<i32>} : memref<8x128xf32, #tpu.memory_space<vmem>>, vector<8x128xf32>,
    return
  }
  func.func @transform_0(%arg0: i32) -> (i32, i32) {
    %c0_i32 = arith.constant 0 : i32
    %c0_i32_0 = arith.constant 0 : i32
    return %arg0, %c0_i32 : i32, i32
  }
  func.func @transform_1(%arg0: i32) -> (i32, i32) {
    %c0_i32 = arith.constant 0 : i32
    %c0_i32_0 = arith.constant 0 : i32
    %c0_i32_1 = arith.constant 0 : i32
    return %c0_i32, %c0_i32_0 : i32, i32
  }
  func.func @transform_2(%arg0: i32) -> (i32, i32) {
    %c0_i32 = arith.constant 0 : i32
    %c0_i32_0 = arith.constant 0 : i32
    %c0_i32_1 = arith.constant 0 : i32
    return %c0_i32, %c0_i32_0 : i32, i32
  }
  func.func @transform_3(%arg0: i32) -> (i32, i32) {
    %c0_i32 = arith.constant 0 : i32
    %c0_i32_0 = arith.constant 0 : i32
    %c0_i32_1 = arith.constant 0 : i32
    return %c0_i32, %c0_i32_0 : i32, i32
  }
  func.func @transform_4(%arg0: i32) -> (i32, i32) {
    %c0_i32 = arith.constant 0 : i32
    %c0_i32_0 = arith.constant 0 : i32
    %c0_i32_1 = arith.constant 0 : i32
    return %c0_i32, %c0_i32_0 : i32, i32
  }
  func.func @transform_5(%arg0: i32) -> (i32, i32) {
    %c0_i32 = arith.constant 0 : i32
    %c0_i32_0 = arith.constant 0 : i32
    return %arg0, %c0_i32 : i32, i32
  }
}

</mosaic_0001>

<llo_original>
// kernel: classification_head.1
$region0: #{classification_head.1}
  #allocation0 [shape = 'u32[]', space=smem, size = 0x4, offset = 0x4, fixed_abs, tag = 'smem constant byte address 0x4 - core index']
  #allocation1 [shape = 'u32[144,128]{1,0:T(1,128)}', space=vmem, size = 0x12000, scoped, tag = 'internal scratch']
  %s0 = inlined_call_operand.vmem [shape: f32[8,32], index: 0, kind: input, shape index: {}]
  %s1 = inlined_call_operand.vmem [shape: bf16[32,32], index: 1, kind: input, shape index: {}]
  %s2 = inlined_call_operand.vmem [shape: f32[1,32], index: 2, kind: input, shape index: {}]
  %s3 = inlined_call_operand.vmem [shape: bf16[32,128], index: 3, kind: input, shape index: {}]
  %s4 = inlined_call_operand.vmem [shape: f32[1,128], index: 4, kind: input, shape index: {}]
  %s5 = inlined_call_operand.vmem [shape: f32[8,128], index: 5, kind: output, shape index: {}]
  %s6 = sld [smem:[#allocation0]]
  $region30: #{classification_head.1} parent=0
    _
  %s8 = ssub.s32 1, %s6
  %s9 = scalar_select 0, %s8, %s6
  // Predicated region
  $region2: #{classification_head.1} parent=0 // pred_check
    _
  $region3: #{classification_head.1} parent=0 // pred_check_branch
    %11 = sbr.rel (0) target = $region5
  $region4: #{classification_head.1} parent=0 // pred_region
    _
  $region5: #{classification_head.1} parent=0 // pred_fallthru
    _
  // Predicated region
  $region6: #{classification_head.1} parent=0 // pred_check
    _
  $region7: #{classification_head.1} parent=0 // pred_check_branch
    %13 = sbr.rel (0) target = $region9
  $region8: #{classification_head.1} parent=0 // pred_region
    _
  $region9: #{classification_head.1} parent=0 // pred_fallthru
    _
  // Predicated region
  $region10: #{classification_head.1} parent=0 // pred_check
    _
  $region11: #{classification_head.1} parent=0 // pred_check_branch
    %15 = sbr.rel (0) target = $region13
  $region12: #{classification_head.1} parent=0 // pred_region
    _
  $region13: #{classification_head.1} parent=0 // pred_fallthru
    _
  // Predicated region
  $region14: #{classification_head.1} parent=0 // pred_check
    _
  $region15: #{classification_head.1} parent=0 // pred_check_branch
    %17 = sbr.rel (0) target = $region17
  $region16: #{classification_head.1} parent=0 // pred_region
    _
  $region17: #{classification_head.1} parent=0 // pred_fallthru
    _
  // Predicated region
  $region18: #{classification_head.1} parent=0 // pred_check
    _
  $region19: #{classification_head.1} parent=0 // pred_check_branch
    %19 = sbr.rel (0) target = $region21
  $region20: #{classification_head.1} parent=0 // pred_region
    _
  $region21: #{classification_head.1} parent=0 // pred_fallthru
    _
  %v21 = vld [vmem:[%s0] sm:$0xff]
  %v22 = vpack.c.bf16 %v21, %v21
  %v23 = vld [vmem:[%s1] sm:$0xf]
  %v24 = vld [vmem:[%s1 + $0x4] sm:$0xf]
  %v25 = vld [vmem:[%s1 + $0x8] sm:$0xf]
  %v26 = vld [vmem:[%s1 + $0xc] sm:$0xf]
  %v27 = vld [vmem:[%s2] sm:$0x1]
  %v29 = vlaneseq
  %v30 = vshrl.u32 %v29, 7
  %v31 = vsub.s32 0, %v30
  %v32 = vrot.slane %v27, %v31
  %v38 = vunpack.c.l.b16 %v23
  %v39 = vunpack.c.l.b16 %v24
  %v40 = vunpack.c.l.b16 %v25
  %v41 = vunpack.c.l.b16 %v26
  %v42 = vpack.c.b16 %v39, %v38
  %v43 = vpack.c.b16 %v41, %v40
  %vm46 = vcmask 261120
  %v48 = vsel %vm46, %v22, 0
  %50 = vmatprep.subr.bf16.mxu0 0
  %51 = vmatpush1.bf16.msra.mxu0 %v42
  %52 = vmatprep.subr.bf16.mxu0 0
  %53 = vmatpush1.bf16.msra.mxu0 %v43
  %54 = vmatprep.subr.bf16.mxu0 0
  %55 = vmatpush1.bf16.msra.mxu0 0
  %56 = vmatprep.subr.bf16.mxu0 0
  %57 = vmatpush1.bf16.msra.mxu0 0
  %58 = vmatprep.subr.bf16.mxu0 0
  %59 = vmatpush1.bf16.msra.mxu0 0
  %60 = vmatprep.subr.bf16.mxu0 0
  %61 = vmatpush1.bf16.msra.mxu0 0
  %62 = vmatprep.subr.bf16.mxu0 0
  %63 = vmatpush1.bf16.msra.mxu0 0
  %64 = vmatprep.subr.bf16.mxu0 0
  %65 = vmatpush1.bf16.msra.mxu0 0
  %66 = vmatprep.subr.bf16.mxu0 0
  %67 = vmatpush1.bf16.msra.mxu0 0
  %68 = vmatprep.subr.bf16.mxu0 0
  %69 = vmatpush1.bf16.msra.mxu0 0
  %70 = vmatprep.subr.bf16.mxu0 0
  %71 = vmatpush1.bf16.msra.mxu0 0
  %72 = vmatprep.subr.bf16.mxu0 0
  %73 = vmatpush1.bf16.msra.mxu0 0
  %74 = vmatprep.subr.bf16.mxu0 0
  %75 = vmatpush1.bf16.msra.mxu0 0
  %76 = vmatprep.subr.bf16.mxu0 0
  %77 = vmatpush1.bf16.msra.mxu0 0
  %78 = vmatprep.subr.bf16.mxu0 0
  %79 = vmatpush1.bf16.msra.mxu0 0
  %80 = vmatprep.subr.bf16.mxu0 0
  %81 = vmatpush1.bf16.msra.mxu0 0
  %82 = vmatprep.mubr.bf16.mxu0 0
  %83 = vmatmul.mubr.bf16.gmra.mrb[0].mxu0 %v48
  %v84 = vpop.f32.mrb[0].mxu0
  %v85 = vadd.f32 %v32, %v84
  %v86 = vpop.f32.mrb[0].mxu0
  %v87 = vpop.f32.mrb[0].mxu0
  %v88 = vpop.f32.mrb[0].mxu0
  %89 = vdwg.mxu0
  %v90 = vtanh.pop %v85
  %v91 = vpack.c.bf16 %v90, %v90
  %v92 = vld [vmem:[%s3] sm:$0xf]
  %v93 = vld [vmem:[%s3 + $0x4] sm:$0xf]
  %v94 = vld [vmem:[%s3 + $0x8] sm:$0xf]
  %v95 = vld [vmem:[%s3 + $0xc] sm:$0xf]
  %v96 = vld [vmem:[%s4] sm:$0x1]
  %v98 = vlaneseq
  %v99 = vshrl.u32 %v98, 7
  %v100 = vsub.s32 0, %v99
  %v101 = vrot.slane %v96, %v100
  %v107 = vunpack.c.l.b16 %v92
  %v108 = vunpack.c.l.b16 %v93
  %v109 = vunpack.c.l.b16 %v94
  %v110 = vunpack.c.l.b16 %v95
  %v111 = vpack.c.b16 %v108, %v107
  %v112 = vpack.c.b16 %v110, %v109
  %v116 = vsel %vm46, %v91, 0
  %118 = vmatprep.subr.bf16.mxu0 0
  %119 = vmatpush1.bf16.msra.mxu0 %v111
  %120 = vmatprep.subr.bf16.mxu0 0
  %121 = vmatpush1.bf16.msra.mxu0 %v112
  %122 = vmatprep.subr.bf16.mxu0 0
  %123 = vmatpush1.bf16.msra.mxu0 0
  %124 = vmatprep.subr.bf16.mxu0 0
  %125 = vmatpush1.bf16.msra.mxu0 0
  %126 = vmatprep.subr.bf16.mxu0 0
  %127 = vmatpush1.bf16.msra.mxu0 0
  %128 = vmatprep.subr.bf16.mxu0 0
  %129 = vmatpush1.bf16.msra.mxu0 0
  %130 = vmatprep.subr.bf16.mxu0 0
  %131 = vmatpush1.bf16.msra.mxu0 0
  %132 = vmatprep.subr.bf16.mxu0 0
  %133 = vmatpush1.bf16.msra.mxu0 0
  %134 = vmatprep.subr.bf16.mxu0 0
  %135 = vmatpush1.bf16.msra.mxu0 0
  %136 = vmatprep.subr.bf16.mxu0 0
  %137 = vmatpush1.bf16.msra.mxu0 0
  %138 = vmatprep.subr.bf16.mxu0 0
  %139 = vmatpush1.bf16.msra.mxu0 0
  %140 = vmatprep.subr.bf16.mxu0 0
  %141 = vmatpush1.bf16.msra.mxu0 0
  %142 = vmatprep.subr.bf16.mxu0 0
  %143 = vmatpush1.bf16.msra.mxu0 0
  %144 = vmatprep.subr.bf16.mxu0 0
  %145 = vmatpush1.bf16.msra.mxu0 0
  %146 = vmatprep.subr.bf16.mxu0 0
  %147 = vmatpush1.bf16.msra.mxu0 0
  %148 = vmatprep.subr.bf16.mxu0 0
  %149 = vmatpush1.bf16.msra.mxu0 0
  %150 = vmatprep.mubr.bf16.mxu0 0
  %151 = vmatmul.mubr.bf16.gmra.mrb[0].mxu0 %v116
  %v152 = vpop.f32.mrb[0].mxu0
  %v153 = vadd.f32 %v101, %v152
  %v154 = vpop.f32.mrb[0].mxu0
  %v155 = vpop.f32.mrb[0].mxu0
  %v156 = vpop.f32.mrb[0].mxu0
  %157 = vdwg.mxu0
  %158 = vst [vmem:[%s5] sm:$0xff] %v153
  // Predicated region
  $region22: #{classification_head.1} parent=0 // pred_check
    _
  $region23: #{classification_head.1} parent=0 // pred_check_branch
    %160 = sbr.rel (0) target = $region25
  $region24: #{classification_head.1} parent=0 // pred_region
    _
  $region25: #{classification_head.1} parent=0 // pred_fallthru
    _
  // Predicated region
  $region26: #{classification_head.1} parent=0 // pred_check
    _
  $region27: #{classification_head.1} parent=0 // pred_check_branch
    %162 = sbr.rel (0) target = $region29
  $region28: #{classification_head.1} parent=0 // pred_region
    _
  $region29: #{classification_head.1} parent=0 // pred_fallthru
    _

</llo_original>
